<compile_context>
chip_gen: v7x
topology: tpu7x:2x2x1
jax: 0.10.0
libtpu: 0.0.40
codegen_flags: <defaults>
</compile_context>

<pallas_src>
import functools

import jax
import jax.numpy as jnp
from jax.experimental import pallas as pl
from jax.experimental.pallas import tpu as pltpu


def _round_up(x, m):
    return ((x + m - 1) // m) * m


def _cdiv(a, b):
    return (a + b - 1) // b


def _fused_kernel(x_ref, wt_ref, o_ref, *, negative_slope):
    # x_ref: (TM, D) tile of the input, wt_ref: (D, D) pre-transposed weight (VMEM-resident),
    # o_ref: (TM, D) output tile.  Operands keep their input dtype; accumulate in f32.
    x = x_ref[...]
    wt = wt_ref[...]
    # v1 = F.linear(x, w, bias=None) = x @ w.T ; weight already transposed in the wrapper.
    v1 = jnp.dot(x, wt, preferred_element_type=jnp.float32)
    if negative_slope == 1.0:
        # where(cond, v1, v1 * 1.0) is the identity -> skip the dead select path.
        out = v1
    else:
        v3 = v1 * jnp.float32(negative_slope)
        # relu(x) == 0  <=>  x <= 0  (identical NaN behaviour: both predicates False).
        out = jnp.where(x <= 0, v1, v3)
    o_ref[...] = out.astype(o_ref.dtype)


def _pick_row_tile(M, D, x_bpe, w_bpe, o_bpe):
    """Choose (row_tile, grid_steps) from a conservative VMEM budget."""
    budget = 24 * 1024 * 1024                       # fits every generation's scoped VMEM
    w_resident = 2 * D * D * w_bpe                  # weight tile (default double-buffered)
    per_row = 2 * D * (x_bpe + o_bpe)               # double-buffered x and out tiles
    avail = max(budget - w_resident, 8 * per_row)
    cap = max(8, min(2048, (avail // per_row) // 8 * 8))

    if M <= cap and M < 256:
        # Tiny M: one block whose row dim equals the full array dim (no 8-alignment needed,
        # no padding, single grid step).
        return M, 1
    if M <= cap:
        # Moderate M that fits in one tile: still split into >=2 row tiles so both v7x
        # TensorCores get work under dimension_semantics=("parallel",).
        tm = _round_up(_cdiv(M, 2), 8)
        return tm, _cdiv(M, tm)
    return cap, _cdiv(M, cap)


def fused_linear_where(x, w, negative_slope=1.0):
    """x: (B, S, D), w: (D, D) square weight.  Returns (B, S, D) in x's dtype."""
    B, S, D = x.shape
    assert w.shape == (D, D), "fused pattern requires square weight (D_out == D_in)"
    M = B * S
    out_dtype = x.dtype

    x_bpe = jnp.dtype(x.dtype).itemsize
    w_bpe = jnp.dtype(w.dtype).itemsize
    o_bpe = jnp.dtype(out_dtype).itemsize

    TM, grid_m = _pick_row_tile(M, D, x_bpe, w_bpe, o_bpe)

    # Zero-copy inputs: reshape only; no pad, no output slice.
    x2d = x.reshape(M, D)
    wt = w.T  # one-time (D, D) relayout so the kernel feeds the MXU directly

    vmem_need = 2 * TM * D * (x_bpe + o_bpe) + 2 * D * D * w_bpe
    vmem_limit = int(min(64 * 1024 * 1024,
                         max(32 * 1024 * 1024, int(vmem_need * 1.5) + (1 << 20))))

    cost = pl.CostEstimate(
        flops=2 * M * D * D,
        transcendentals=0,
        bytes_accessed=M * D * (x_bpe + o_bpe) + D * D * w_bpe,
    )

    kernel = functools.partial(_fused_kernel, negative_slope=float(negative_slope))

    out = pl.pallas_call(
        kernel,
        out_shape=jax.ShapeDtypeStruct((M, D), out_dtype),
        grid_spec=pltpu.PrefetchScalarGridSpec(
            num_scalar_prefetch=0,
            grid=(grid_m,),
            in_specs=[
                pl.BlockSpec((TM, D), lambda i: (i, 0)),
                pl.BlockSpec((D, D), lambda i: (0, 0)),  # constant index: fetched once
            ],
            out_specs=pl.BlockSpec((TM, D), lambda i: (i, 0)),
        ),
        compiler_params=pltpu.CompilerParams(
            dimension_semantics=("parallel",),   # row tiles are fully independent
            vmem_limit_bytes=vmem_limit,
        ),
        cost_estimate=cost,
    )(x2d, wt)

    return out.reshape(B, S, D)


def reference(x, w, negative_slope=1.0):
    v1 = jnp.einsum("bsd,od->bso", x.astype(jnp.float32), w.astype(jnp.float32))
    v3 = v1 * negative_slope
    out = jnp.where(jnp.maximum(x.astype(jnp.float32), 0.0) == 0.0, v1, v3)
    return out.astype(x.dtype)


if __name__ == "__main__":
    key = jax.random.PRNGKey(0)
    kx, kw, kx2, kw2 = jax.random.split(key, 4)

    # Small shapes consistent with the module's (1, 12, C) sequence layout (square weight).
    B, S, D = 1, 12, 8
    x = jax.random.normal(kx, (B, S, D), dtype=jnp.float32)
    w = jax.random.uniform(kw, (D, D), dtype=jnp.float32)   # torch.rand -> uniform [0, 1)

    # Module's configuration: negative_slope = 1 (select is an identity, elided).
    out = fused_linear_where(x, w, negative_slope=1.0)
    jax.block_until_ready(out)
    assert out.shape == (B, S, D)
    assert jnp.allclose(out, reference(x, w, 1.0), atol=1e-5, rtol=1e-5)

    # Exercise the real select path with a non-unit slope.
    out2 = fused_linear_where(x, w, negative_slope=0.5)
    jax.block_until_ready(out2)
    assert jnp.allclose(out2, reference(x, w, 0.5), atol=1e-5, rtol=1e-5)

    # Multi-tile path (grid of 2 row tiles, masked tail block, D < 128) in bf16 to exercise
    # the native-dtype MXU path recommended by the perf review.
    B2, S2, D2 = 2, 150, 32
    xb = jax.random.normal(kx2, (B2, S2, D2), dtype=jnp.float32).astype(jnp.bfloat16)
    wb = jax.random.uniform(kw2, (D2, D2), dtype=jnp.float32).astype(jnp.bfloat16)
    out3 = fused_linear_where(xb, wb, negative_slope=0.5)
    jax.block_until_ready(out3)
    ref3 = reference(xb, wb, 0.5)
    assert out3.shape == (B2, S2, D2)
    assert jnp.allclose(out3.astype(jnp.float32), ref3.astype(jnp.float32),
                        atol=2e-2, rtol=2e-2)

    print("KERNEL_OK")
</pallas_src>

<mosaic_0001>
module attributes {stable_mosaic.version = 11 : i64} {
  func.func @_fused_kernel(%arg0: i32, %arg1: memref<12x8xf32, #tpu.memory_space<vmem>>, %arg2: memref<8x8xf32, #tpu.memory_space<vmem>>, %arg3: memref<12x8xf32, #tpu.memory_space<vmem>>) attributes {dimension_semantics = [#tpu.dimension_semantics<parallel>], iteration_bounds = array<i64: 1>, scalar_prefetch = 0 : i64, scratch_operands = 0 : i64, tpu.core_type = #tpu.core_type<tc>, window_params = [{transform_indices = @transform_0, window_bounds = array<i64: 12, 8>}, {pipeline_mode = #tpu.pipeline_mode<synchronous>, transform_indices = @transform_1, window_bounds = array<i64: 8, 8>}, {transform_indices = @transform_2, window_bounds = array<i64: 12, 8>}]} {
    %c0 = arith.constant 0 : index
    %c0_0 = arith.constant 0 : index
    %0 = vector.load %arg1[%c0, %c0_0] : memref<12x8xf32, #tpu.memory_space<vmem>>, vector<12x8xf32>
    %c0_1 = arith.constant 0 : index
    %c0_2 = arith.constant 0 : index
    %1 = vector.load %arg2[%c0_1, %c0_2] : memref<8x8xf32, #tpu.memory_space<vmem>>, vector<8x8xf32>
    %cst = arith.constant dense<0.000000e+00> : vector<12x8xf32>
    %2 = tpu.matmul %0, %1, %cst {dimension_numbers = #tpu.dot_dimension_numbers<[1], [0], [0], [1], [0, 0, 1, 1], [], []>} : vector<12x8xf32>, vector<8x8xf32>, vector<12x8xf32> -> vector<12x8xf32>
    %c0_3 = arith.constant 0 : index
    %c0_4 = arith.constant 0 : index
    %3 = vector.load %arg3[%c0_3, %c0_4] : memref<12x8xf32, #tpu.memory_space<vmem>>, vector<12x8xf32>
    tpu.vector_store %arg3[%c0_3, %c0_4], %2 {strides = array<i32>} : memref<12x8xf32, #tpu.memory_space<vmem>>, vector<12x8xf32>,
    return
  }
  func.func @transform_0(%arg0: i32) -> (i32, i32) {
    %c0_i32 = arith.constant 0 : i32
    %c0_i32_0 = arith.constant 0 : i32
    return %arg0, %c0_i32 : i32, i32
  }
  func.func @transform_1(%arg0: i32) -> (i32, i32) {
    %c0_i32 = arith.constant 0 : i32
    %c0_i32_0 = arith.constant 0 : i32
    %c0_i32_1 = arith.constant 0 : i32
    return %c0_i32, %c0_i32_0 : i32, i32
  }
  func.func @transform_2(%arg0: i32) -> (i32, i32) {
    %c0_i32 = arith.constant 0 : i32
    %c0_i32_0 = arith.constant 0 : i32
    return %arg0, %c0_i32 : i32, i32
  }
}

</mosaic_0001>

<llo_original>
// kernel: tpu_custom_call.1
$region0: #{tpu_custom_call.1}
  #allocation0 [shape = 'u32[]', space=smem, size = 0x4, offset = 0x4, fixed_abs, tag = 'smem constant byte address 0x4 - core index']
  #allocation1 [shape = 'u32[144,128]{1,0:T(1,128)}', space=vmem, size = 0x12000, scoped, tag = 'internal scratch']
  %s0 = inlined_call_operand.vmem [shape: f32[12,8], index: 0, kind: input, shape index: {}]
  %s1 = inlined_call_operand.vmem [shape: f32[8,8], index: 1, kind: input, shape index: {}]
  %s2 = inlined_call_operand.vmem [shape: f32[12,8], index: 2, kind: output, shape index: {}]
  %s3 = sld [smem:[#allocation0]]
  $region18: #{tpu_custom_call.1} parent=0
    _
  %s5 = ssub.s32 1, %s3
  %s6 = scalar_select 0, %s5, %s3
  // Predicated region
  $region2: #{tpu_custom_call.1} parent=0 // pred_check
    _
  $region3: #{tpu_custom_call.1} parent=0 // pred_check_branch
    %8 = sbr.rel (0) target = $region5
  $region4: #{tpu_custom_call.1} parent=0 // pred_region
    _
  $region5: #{tpu_custom_call.1} parent=0 // pred_fallthru
    _
  // Predicated region
  $region6: #{tpu_custom_call.1} parent=0 // pred_check
    _
  $region7: #{tpu_custom_call.1} parent=0 // pred_check_branch
    %10 = sbr.rel (0) target = $region9
  $region8: #{tpu_custom_call.1} parent=0 // pred_region
    _
  $region9: #{tpu_custom_call.1} parent=0 // pred_fallthru
    _
  %v11 = vld [vmem:[%s0] sm:$0xff]
  %v12 = vld [vmem:[%s0 + $0x8] sm:$0xf]
  %v13 = vld [vmem:[%s1] sm:$0xff]
  %vm14 = vcmask 64512
  %v16 = vsel %vm14, %v11, 0
  %v19 = vsel %vm14, %v12, 0
  %21 = vmatprep.subr.mxu0 0.0
  %22 = vmatpush1.msra.mxu0 %v13
  %23 = vmatprep.subr.mxu0 0.0
  %24 = vmatpush1.msra.mxu0 0.0
  %25 = vmatprep.subr.mxu0 0.0
  %26 = vmatpush1.msra.mxu0 0.0
  %27 = vmatprep.subr.mxu0 0.0
  %28 = vmatpush1.msra.mxu0 0.0
  %29 = vmatprep.subr.mxu0 0.0
  %30 = vmatpush1.msra.mxu0 0.0
  %31 = vmatprep.subr.mxu0 0.0
  %32 = vmatpush1.msra.mxu0 0.0
  %33 = vmatprep.subr.mxu0 0.0
  %34 = vmatpush1.msra.mxu0 0.0
  %35 = vmatprep.subr.mxu0 0.0
  %36 = vmatpush1.msra.mxu0 0.0
  %37 = vmatprep.subr.mxu0 0.0
  %38 = vmatpush1.msra.mxu0 0.0
  %39 = vmatprep.subr.mxu0 0.0
  %40 = vmatpush1.msra.mxu0 0.0
  %41 = vmatprep.subr.mxu0 0.0
  %42 = vmatpush1.msra.mxu0 0.0
  %43 = vmatprep.subr.mxu0 0.0
  %44 = vmatpush1.msra.mxu0 0.0
  %45 = vmatprep.subr.mxu0 0.0
  %46 = vmatpush1.msra.mxu0 0.0
  %47 = vmatprep.subr.mxu0 0.0
  %48 = vmatpush1.msra.mxu0 0.0
  %49 = vmatprep.subr.mxu0 0.0
  %50 = vmatpush1.msra.mxu0 0.0
  %51 = vmatprep.subr.mxu0 0.0
  %52 = vmatpush1.msra.mxu0 0.0
  %53 = vmatprep.subr.mxu0 0.0
  %54 = vmatpush1.msra.mxu0 0.0
  %55 = vmatprep.subr.mxu0 0.0
  %56 = vmatpush1.msra.mxu0 0.0
  %57 = vmatprep.subr.mxu0 0.0
  %58 = vmatpush1.msra.mxu0 0.0
  %59 = vmatprep.subr.mxu0 0.0
  %60 = vmatpush1.msra.mxu0 0.0
  %61 = vmatprep.subr.mxu0 0.0
  %62 = vmatpush1.msra.mxu0 0.0
  %63 = vmatprep.subr.mxu0 0.0
  %64 = vmatpush1.msra.mxu0 0.0
  %65 = vmatprep.subr.mxu0 0.0
  %66 = vmatpush1.msra.mxu0 0.0
  %67 = vmatprep.subr.mxu0 0.0
  %68 = vmatpush1.msra.mxu0 0.0
  %69 = vmatprep.subr.mxu0 0.0
  %70 = vmatpush1.msra.mxu0 0.0
  %71 = vmatprep.subr.mxu0 0.0
  %72 = vmatpush1.msra.mxu0 0.0
  %73 = vmatprep.subr.mxu0 0.0
  %74 = vmatpush1.msra.mxu0 0.0
  %75 = vmatprep.subr.mxu0 0.0
  %76 = vmatpush1.msra.mxu0 0.0
  %77 = vmatprep.subr.mxu0 0.0
  %78 = vmatpush1.msra.mxu0 0.0
  %79 = vmatprep.subr.mxu0 0.0
  %80 = vmatpush1.msra.mxu0 0.0
  %81 = vmatprep.subr.mxu0 0.0
  %82 = vmatpush1.msra.mxu0 0.0
  %83 = vmatprep.subr.mxu0 0.0
  %84 = vmatpush1.msra.mxu0 0.0
  %85 = vmatprep.mubr.f32.mxu0 0.0
  %86 = vmatmul.mubr.f32.gmra.mrb[0].mxu0 %v16
  %v87 = vpop.f32.mrb[0].mxu0
  %v88 = vadd.f32 0.0, %v87
  %v89 = vpop.f32.mrb[0].mxu0
  %90 = vmatprep.mubr.f32.mxu0 0.0
  %91 = vmatmul.mubr.f32.gmra.mrb[0].mxu0 %v19
  %v92 = vpop.f32.mrb[0].mxu0
  %v93 = vadd.f32 0.0, %v92
  %v94 = vpop.f32.mrb[0].mxu0
  %95 = vdwg.mxu0
  %96 = vst.msk [vmem:[%s2] sm:$0xff] %vm14, %v88
  %vm97 = vcmask 60416
  %98 = vst.msk [vmem:[%s2 + $0x8] sm:$0xf] %vm97, %v93
  // Predicated region
  $region10: #{tpu_custom_call.1} parent=0 // pred_check
    _
  $region11: #{tpu_custom_call.1} parent=0 // pred_check_branch
    %100 = sbr.rel (0) target = $region13
  $region12: #{tpu_custom_call.1} parent=0 // pred_region
    _
  $region13: #{tpu_custom_call.1} parent=0 // pred_fallthru
    _
  // Predicated region
  $region14: #{tpu_custom_call.1} parent=0 // pred_check
    _
  $region15: #{tpu_custom_call.1} parent=0 // pred_check_branch
    %102 = sbr.rel (0) target = $region17
  $region16: #{tpu_custom_call.1} parent=0 // pred_region
    _
  $region17: #{tpu_custom_call.1} parent=0 // pred_fallthru
    _

</llo_original>
